<compile_context>
chip_gen: v6e
topology: v6e:2x2x1
jax: 0.10.0
libtpu: 0.0.40
codegen_flags: <defaults>
</compile_context>

<pallas_src>
import functools

import jax
import jax.numpy as jnp
from jax.experimental import pallas as pl
from jax.experimental.pallas import tpu as pltpu

BALANCING_WEIGHTS = (1.0, 2.0, 5.0, 10.0, 30.0)
W_DEFAULT = 0.99

LANE = 128
ROWS_MAX = 2048  # rows of 128 lanes per block -> 1 MiB per f32 input block


def _loss_partials_kernel(pred_ref, targ_ref, mask_ref,
                          out_wae_ref, out_sq_ref,
                          acc_wae, acc_p, acc_p2, acc_t, acc_t2,
                          *, rows, n_inner):
    """grid = (B, S, C).  Axis 0 ('parallel') walks batches; axes 1/2 reduce.

    Each grid step sees a (rows, 128) tile of pred / targ / mask belonging to
    batch b.  Five (8, 128) VMEM accumulators hold per-batch partial sums;
    they are reset at (s==0, c==0) and turned into the two per-batch outputs
    (weighted-AE sum and squared std difference) at the last (s, c) step.
    """
    s = pl.program_id(1)
    c = pl.program_id(2)

    @pl.when((s == 0) & (c == 0))
    def _init():
        acc_wae[...] = jnp.zeros_like(acc_wae)
        acc_p[...] = jnp.zeros_like(acc_p)
        acc_p2[...] = jnp.zeros_like(acc_p2)
        acc_t[...] = jnp.zeros_like(acc_t)
        acc_t2[...] = jnp.zeros_like(acc_t2)

    pred = pred_ref[...].astype(jnp.float32)   # (rows, 128)
    targ = targ_ref[...].astype(jnp.float32)
    msk = mask_ref[...].astype(jnp.float32)

    # ---- compute_weights (pure VPU, elementwise) ----
    weights = jnp.full_like(targ, BALANCING_WEIGHTS[0])
    for i in range(1, len(BALANCING_WEIGHTS)):
        weights = weights + (BALANCING_WEIGHTS[i] - BALANCING_WEIGHTS[i - 1]) * (
            targ >= BALANCING_WEIGHTS[i]).astype(jnp.float32)
    weights = weights * msk

    wae = weights * jnp.abs(pred - targ)

    # ---- per-tile partial sums, VPU-only (defer the cross-lane reduce) ----
    g = rows // 8  # wrapper guarantees rows % 8 == 0

    def psum(x):                       # (rows,128) -> (8,128) via VPU adds
        return jnp.sum(x.reshape(g, 8, LANE), axis=0)

    acc_wae[...] += psum(wae)
    acc_p[...] += psum(pred)
    acc_p2[...] += psum(pred * pred)
    acc_t[...] += psum(targ)
    acc_t2[...] += psum(targ * targ)

    # ---- finalize this batch on the last reduction step ----
    @pl.when((s == pl.num_programs(1) - 1) & (c == pl.num_programs(2) - 1))
    def _fin():
        m = jnp.float32(n_inner)
        wae_s = jnp.sum(acc_wae[...])
        p_s = jnp.sum(acc_p[...])
        p2_s = jnp.sum(acc_p2[...])
        t_s = jnp.sum(acc_t[...])
        t2_s = jnp.sum(acc_t2[...])
        # Unbiased (ddof=1) variance, one-pass E[x^2]-E[x]^2 form.
        # NOTE: can lose precision if |mean| >> std (Welford merge would fix);
        #       undefined for n_inner == 1 (same as torch.std with ddof=1).
        var_p = (p2_s - p_s * p_s / m) / (m - 1.0)
        var_t = (t2_s - t_s * t_s / m) / (m - 1.0)
        std_p = jnp.sqrt(jnp.maximum(var_p, 0.0))
        std_t = jnp.sqrt(jnp.maximum(var_t, 0.0))
        sq = (std_p - std_t) * (std_p - std_t)
        out_wae_ref[...] = jnp.full(out_wae_ref.shape, wae_s, jnp.float32)
        out_sq_ref[...] = jnp.full(out_sq_ref.shape, sq, jnp.float32)


def weighted_mae_loss_diversify(prediction, target, mask, w=W_DEFAULT):
    """prediction: (S, B, H, W); target, mask: (B, S, H, W). Returns scalar."""
    S, B, H, W = prediction.shape
    assert target.shape == (B, S, H, W) and mask.shape == (B, S, H, W)
    L = H * W
    M = S * L  # true per-batch element count (for means / variance)

    # ---- tile the H*W axis: C chunks of (R rows x 128 lanes), R % 8 == 0 ----
    rows_raw = pl.cdiv(L, LANE)
    if rows_raw <= ROWS_MAX:
        R = ((rows_raw + 7) // 8) * 8     # one chunk, packed (8,128) tiles
        C = 1
    else:
        R = ROWS_MAX                      # already a multiple of 8
        C = pl.cdiv(rows_raw, R)
    Lp = C * R * LANE

    # Free reshapes (trailing dims only); no transpose of `prediction`.
    pred3 = prediction.reshape(S, B, L)
    targ3 = target.reshape(B, S, L)
    mask3 = mask.reshape(B, S, L)
    if Lp != L:
        # Zero padding is harmless: padded mask==0 kills the MAE term and
        # padded pred/targ==0 contribute nothing to sums / sums of squares
        # (the true count n_inner=M is used in the finalize).  This is a
        # no-op for typical image sizes (H*W a multiple of 1024).
        pad = ((0, 0), (0, 0), (0, Lp - L))
        pred3 = jnp.pad(pred3, pad)
        targ3 = jnp.pad(targ3, pad)
        mask3 = jnp.pad(mask3, pad)

    pred4 = pred3.reshape(S, B, C * R, LANE)
    targ4 = targ3.reshape(B, S, C * R, LANE)
    mask4 = mask3.reshape(B, S, C * R, LANE)

    kernel = functools.partial(_loss_partials_kernel, rows=R, n_inner=M)

    out_wae, out_sq = pl.pallas_call(
        kernel,
        out_shape=(jax.ShapeDtypeStruct((B, 8, LANE), jnp.float32),
                   jax.ShapeDtypeStruct((B, 8, LANE), jnp.float32)),
        grid_spec=pltpu.PrefetchScalarGridSpec(
            num_scalar_prefetch=0,
            grid=(B, S, C),
            in_specs=[
                # prediction is (S, B, rows, 128): swap (b, s) in the index_map
                pl.BlockSpec((None, None, R, LANE), lambda b, s, c: (s, b, c, 0)),
                pl.BlockSpec((None, None, R, LANE), lambda b, s, c: (b, s, c, 0)),
                pl.BlockSpec((None, None, R, LANE), lambda b, s, c: (b, s, c, 0)),
            ],
            out_specs=[
                pl.BlockSpec((None, 8, LANE), lambda b, s, c: (b, 0, 0)),
                pl.BlockSpec((None, 8, LANE), lambda b, s, c: (b, 0, 0)),
            ],
            scratch_shapes=[pltpu.VMEM((8, LANE), jnp.float32)] * 5,
        ),
        compiler_params=pltpu.CompilerParams(
            dimension_semantics=("parallel", "arbitrary", "arbitrary"),
            vmem_limit_bytes=48 * 1024 * 1024),
    )(pred4, targ4, mask4)

    wae_b = out_wae[:, 0, 0]   # per-batch sum of weights * |pred - targ|
    sq_b = out_sq[:, 0, 0]     # per-batch (std_pred - std_targ)^2
    mae = jnp.sum(wae_b) / jnp.float32(B * M)
    stdev_mse = jnp.mean(sq_b)
    return jnp.float32(w) * mae + jnp.float32(1.0 - w) * stdev_mse


def _reference(prediction, target, mask, w=W_DEFAULT):
    """Pure-JAX reference matching the PyTorch forward."""
    pred = jnp.transpose(prediction, (1, 0, 2, 3)).astype(jnp.float32)
    target = target.astype(jnp.float32)
    mask = mask.astype(jnp.float32)
    weights = jnp.full_like(mask, BALANCING_WEIGHTS[0])
    for i in range(1, len(BALANCING_WEIGHTS)):
        weights = weights + (BALANCING_WEIGHTS[i] - BALANCING_WEIGHTS[i - 1]) * (
            target >= BALANCING_WEIGHTS[i]).astype(jnp.float32)
    weights = weights * mask
    mae = jnp.mean(weights * jnp.abs(pred - target))
    N = target.shape[0]
    std_p = jnp.std(pred.reshape(N, -1), axis=1, ddof=1)
    std_t = jnp.std(target.reshape(N, -1), axis=1, ddof=1)
    stdev_mse = jnp.mean((std_p - std_t) ** 2)
    return w * mae + (1.0 - w) * stdev_mse


if __name__ == "__main__":
    # Small shapes consistent with the module: seq=8, batch=2, H=W=16.
    S, B, H, W = 8, 2, 16, 16
    key = jax.random.PRNGKey(0)
    k1, k2, k3 = jax.random.split(key, 3)

    prediction = jax.random.uniform(k1, (S, B, H, W), jnp.float32) * 35.0
    target = jax.random.uniform(k2, (B, S, H, W), jnp.float32) * 35.0
    mask = (jax.random.uniform(k3, (B, S, H, W), jnp.float32) > 0.3).astype(
        jnp.float32)

    out = weighted_mae_loss_diversify(prediction, target, mask)
    out = jax.block_until_ready(out)

    ref = _reference(prediction, target, mask)
    assert jnp.allclose(out, ref, rtol=1e-4, atol=1e-5), (out, ref)

    print("KERNEL_OK")
</pallas_src>

<mosaic_0001>
module attributes {stable_mosaic.version = 11 : i64} {
  func.func @_loss_partials_kernel(%arg0: i32, %arg1: i32, %arg2: i32, %arg3: memref<1x1x8x128xf32, #tpu.memory_space<vmem>>, %arg4: memref<1x1x8x128xf32, #tpu.memory_space<vmem>>, %arg5: memref<1x1x8x128xf32, #tpu.memory_space<vmem>>, %arg6: memref<1x8x128xf32, #tpu.memory_space<vmem>>, %arg7: memref<1x8x128xf32, #tpu.memory_space<vmem>>, %arg8: memref<8x128xf32, #tpu.memory_space<vmem>>, %arg9: memref<8x128xf32, #tpu.memory_space<vmem>>, %arg10: memref<8x128xf32, #tpu.memory_space<vmem>>, %arg11: memref<8x128xf32, #tpu.memory_space<vmem>>, %arg12: memref<8x128xf32, #tpu.memory_space<vmem>>) attributes {dimension_semantics = [#tpu.dimension_semantics<parallel>, #tpu.dimension_semantics<arbitrary>, #tpu.dimension_semantics<arbitrary>], iteration_bounds = array<i64: 2, 8, 1>, scalar_prefetch = 0 : i64, scratch_operands = 5 : i64, tpu.core_type = #tpu.core_type<tc>, window_params = [{transform_indices = @transform_0, window_bounds = array<i64: 1, 1, 8, 128>}, {transform_indices = @transform_1, window_bounds = array<i64: 1, 1, 8, 128>}, {transform_indices = @transform_2, window_bounds = array<i64: 1, 1, 8, 128>}, {transform_indices = @transform_3, window_bounds = array<i64: 1, 8, 128>}, {transform_indices = @transform_4, window_bounds = array<i64: 1, 8, 128>}]} {
    %c0_i32 = arith.constant 0 : i32
    %0 = arith.cmpi eq, %arg1, %c0_i32 : i32
    %c0_i32_0 = arith.constant 0 : i32
    %1 = arith.cmpi eq, %arg2, %c0_i32_0 : i32
    %2 = arith.andi %0, %1 : i1
    %3 = arith.extui %2 : i1 to i32
    %c0_i32_1 = arith.constant 0 : i32
    %4 = arith.cmpi ne, %3, %c0_i32_1 : i32
    scf.if %4 {
      %cst_48 = arith.constant 0.000000e+00 : f32
      %76 = vector.broadcast %cst_48 : f32 to vector<8x128xf32>
      %c0_49 = arith.constant 0 : index
      %c0_50 = arith.constant 0 : index
      %77 = vector.load %arg8[%c0_49, %c0_50] : memref<8x128xf32, #tpu.memory_space<vmem>>, vector<8x128xf32>
      tpu.vector_store %arg8[%c0_49, %c0_50], %76 {strides = array<i32>} : memref<8x128xf32, #tpu.memory_space<vmem>>, vector<8x128xf32>,
      %cst_51 = arith.constant 0.000000e+00 : f32
      %78 = vector.broadcast %cst_51 : f32 to vector<8x128xf32>
      %c0_52 = arith.constant 0 : index
      %c0_53 = arith.constant 0 : index
      %79 = vector.load %arg9[%c0_52, %c0_53] : memref<8x128xf32, #tpu.memory_space<vmem>>, vector<8x128xf32>
      tpu.vector_store %arg9[%c0_52, %c0_53], %78 {strides = array<i32>} : memref<8x128xf32, #tpu.memory_space<vmem>>, vector<8x128xf32>,
      %cst_54 = arith.constant 0.000000e+00 : f32
      %80 = vector.broadcast %cst_54 : f32 to vector<8x128xf32>
      %c0_55 = arith.constant 0 : index
      %c0_56 = arith.constant 0 : index
      %81 = vector.load %arg10[%c0_55, %c0_56] : memref<8x128xf32, #tpu.memory_space<vmem>>, vector<8x128xf32>
      tpu.vector_store %arg10[%c0_55, %c0_56], %80 {strides = array<i32>} : memref<8x128xf32, #tpu.memory_space<vmem>>, vector<8x128xf32>,
      %cst_57 = arith.constant 0.000000e+00 : f32
      %82 = vector.broadcast %cst_57 : f32 to vector<8x128xf32>
      %c0_58 = arith.constant 0 : index
      %c0_59 = arith.constant 0 : index
      %83 = vector.load %arg11[%c0_58, %c0_59] : memref<8x128xf32, #tpu.memory_space<vmem>>, vector<8x128xf32>
      tpu.vector_store %arg11[%c0_58, %c0_59], %82 {strides = array<i32>} : memref<8x128xf32, #tpu.memory_space<vmem>>, vector<8x128xf32>,
      %cst_60 = arith.constant 0.000000e+00 : f32
      %84 = vector.broadcast %cst_60 : f32 to vector<8x128xf32>
      %c0_61 = arith.constant 0 : index
      %c0_62 = arith.constant 0 : index
      %85 = vector.load %arg12[%c0_61, %c0_62] : memref<8x128xf32, #tpu.memory_space<vmem>>, vector<8x128xf32>
      tpu.vector_store %arg12[%c0_61, %c0_62], %84 {strides = array<i32>} : memref<8x128xf32, #tpu.memory_space<vmem>>, vector<8x128xf32>,
    } else {
    }
    %c0 = arith.constant 0 : index
    %c0_2 = arith.constant 0 : index
    %c0_3 = arith.constant 0 : index
    %c0_4 = arith.constant 0 : index
    %5 = vector.load %arg3[%c0, %c0_2, %c0_3, %c0_4] : memref<1x1x8x128xf32, #tpu.memory_space<vmem>>, vector<1x1x8x128xf32>
    %6 = vector.shape_cast %5 : vector<1x1x8x128xf32> to vector<8x128xf32>
    %c0_5 = arith.constant 0 : index
    %c0_6 = arith.constant 0 : index
    %c0_7 = arith.constant 0 : index
    %c0_8 = arith.constant 0 : index
    %7 = vector.load %arg4[%c0_5, %c0_6, %c0_7, %c0_8] : memref<1x1x8x128xf32, #tpu.memory_space<vmem>>, vector<1x1x8x128xf32>
    %8 = vector.shape_cast %7 : vector<1x1x8x128xf32> to vector<8x128xf32>
    %c0_9 = arith.constant 0 : index
    %c0_10 = arith.constant 0 : index
    %c0_11 = arith.constant 0 : index
    %c0_12 = arith.constant 0 : index
    %9 = vector.load %arg5[%c0_9, %c0_10, %c0_11, %c0_12] : memref<1x1x8x128xf32, #tpu.memory_space<vmem>>, vector<1x1x8x128xf32>
    %10 = vector.shape_cast %9 : vector<1x1x8x128xf32> to vector<8x128xf32>
    %cst = arith.constant 1.000000e+00 : f32
    %11 = vector.broadcast %cst : f32 to vector<8x128xf32>
    %cst_13 = arith.constant 2.000000e+00 : f32
    %12 = vector.broadcast %cst_13 : f32 to vector<8x128xf32>
    %13 = arith.cmpf oge, %8, %12 : vector<8x128xf32>
    %14 = arith.extui %13 : vector<8x128xi1> to vector<8x128xi32>
    %15 = arith.sitofp %14 : vector<8x128xi32> to vector<8x128xf32>
    %cst_14 = arith.constant 1.000000e+00 : f32
    %16 = vector.broadcast %cst_14 : f32 to vector<8x128xf32>
    %17 = arith.mulf %16, %15 : vector<8x128xf32>
    %18 = arith.addf %11, %17 : vector<8x128xf32>
    %cst_15 = arith.constant 5.000000e+00 : f32
    %19 = vector.broadcast %cst_15 : f32 to vector<8x128xf32>
    %20 = arith.cmpf oge, %8, %19 : vector<8x128xf32>
    %21 = arith.extui %20 : vector<8x128xi1> to vector<8x128xi32>
    %22 = arith.sitofp %21 : vector<8x128xi32> to vector<8x128xf32>
    %cst_16 = arith.constant 3.000000e+00 : f32
    %23 = vector.broadcast %cst_16 : f32 to vector<8x128xf32>
    %24 = arith.mulf %23, %22 : vector<8x128xf32>
    %25 = arith.addf %18, %24 : vector<8x128xf32>
    %cst_17 = arith.constant 1.000000e+01 : f32
    %26 = vector.broadcast %cst_17 : f32 to vector<8x128xf32>
    %27 = arith.cmpf oge, %8, %26 : vector<8x128xf32>
    %28 = arith.extui %27 : vector<8x128xi1> to vector<8x128xi32>
    %29 = arith.sitofp %28 : vector<8x128xi32> to vector<8x128xf32>
    %cst_18 = arith.constant 5.000000e+00 : f32
    %30 = vector.broadcast %cst_18 : f32 to vector<8x128xf32>
    %31 = arith.mulf %30, %29 : vector<8x128xf32>
    %32 = arith.addf %25, %31 : vector<8x128xf32>
    %cst_19 = arith.constant 3.000000e+01 : f32
    %33 = vector.broadcast %cst_19 : f32 to vector<8x128xf32>
    %34 = arith.cmpf oge, %8, %33 : vector<8x128xf32>
    %35 = arith.extui %34 : vector<8x128xi1> to vector<8x128xi32>
    %36 = arith.sitofp %35 : vector<8x128xi32> to vector<8x128xf32>
    %cst_20 = arith.constant 2.000000e+01 : f32
    %37 = vector.broadcast %cst_20 : f32 to vector<8x128xf32>
    %38 = arith.mulf %37, %36 : vector<8x128xf32>
    %39 = arith.addf %32, %38 : vector<8x128xf32>
    %40 = arith.mulf %39, %10 : vector<8x128xf32>
    %41 = arith.subf %6, %8 : vector<8x128xf32>
    %42 = math.absf %41 : vector<8x128xf32>
    %43 = arith.mulf %40, %42 : vector<8x128xf32>
    %c0_21 = arith.constant 0 : index
    %c0_22 = arith.constant 0 : index
    %44 = vector.load %arg8[%c0_21, %c0_22] : memref<8x128xf32, #tpu.memory_space<vmem>>, vector<8x128xf32>
    %45 = vector.shape_cast %43 : vector<8x128xf32> to vector<1x8x128xf32>
    %cst_23 = arith.constant dense<0.000000e+00> : vector<8x128xf32>
    %46 = vector.multi_reduction <add>, %45, %cst_23 [0] : vector<1x8x128xf32> to vector<8x128xf32>
    %47 = arith.addf %44, %46 : vector<8x128xf32>
    %c0_24 = arith.constant 0 : index
    %c0_25 = arith.constant 0 : index
    %48 = vector.load %arg8[%c0_24, %c0_25] : memref<8x128xf32, #tpu.memory_space<vmem>>, vector<8x128xf32>
    tpu.vector_store %arg8[%c0_24, %c0_25], %47 {strides = array<i32>} : memref<8x128xf32, #tpu.memory_space<vmem>>, vector<8x128xf32>,
    %c0_26 = arith.constant 0 : index
    %c0_27 = arith.constant 0 : index
    %49 = vector.load %arg9[%c0_26, %c0_27] : memref<8x128xf32, #tpu.memory_space<vmem>>, vector<8x128xf32>
    %50 = vector.shape_cast %6 : vector<8x128xf32> to vector<1x8x128xf32>
    %cst_28 = arith.constant dense<0.000000e+00> : vector<8x128xf32>
    %51 = vector.multi_reduction <add>, %50, %cst_28 [0] : vector<1x8x128xf32> to vector<8x128xf32>
    %52 = arith.addf %49, %51 : vector<8x128xf32>
    %c0_29 = arith.constant 0 : index
    %c0_30 = arith.constant 0 : index
    %53 = vector.load %arg9[%c0_29, %c0_30] : memref<8x128xf32, #tpu.memory_space<vmem>>, vector<8x128xf32>
    tpu.vector_store %arg9[%c0_29, %c0_30], %52 {strides = array<i32>} : memref<8x128xf32, #tpu.memory_space<vmem>>, vector<8x128xf32>,
    %c0_31 = arith.constant 0 : index
    %c0_32 = arith.constant 0 : index
    %54 = vector.load %arg10[%c0_31, %c0_32] : memref<8x128xf32, #tpu.memory_space<vmem>>, vector<8x128xf32>
    %55 = arith.mulf %6, %6 : vector<8x128xf32>
    %56 = vector.shape_cast %55 : vector<8x128xf32> to vector<1x8x128xf32>
    %cst_33 = arith.constant dense<0.000000e+00> : vector<8x128xf32>
    %57 = vector.multi_reduction <add>, %56, %cst_33 [0] : vector<1x8x128xf32> to vector<8x128xf32>
    %58 = arith.addf %54, %57 : vector<8x128xf32>
    %c0_34 = arith.constant 0 : index
    %c0_35 = arith.constant 0 : index
    %59 = vector.load %arg10[%c0_34, %c0_35] : memref<8x128xf32, #tpu.memory_space<vmem>>, vector<8x128xf32>
    tpu.vector_store %arg10[%c0_34, %c0_35], %58 {strides = array<i32>} : memref<8x128xf32, #tpu.memory_space<vmem>>, vector<8x128xf32>,
    %c0_36 = arith.constant 0 : index
    %c0_37 = arith.constant 0 : index
    %60 = vector.load %arg11[%c0_36, %c0_37] : memref<8x128xf32, #tpu.memory_space<vmem>>, vector<8x128xf32>
    %61 = vector.shape_cast %8 : vector<8x128xf32> to vector<1x8x128xf32>
    %cst_38 = arith.constant dense<0.000000e+00> : vector<8x128xf32>
    %62 = vector.multi_reduction <add>, %61, %cst_38 [0] : vector<1x8x128xf32> to vector<8x128xf32>
    %63 = arith.addf %60, %62 : vector<8x128xf32>
    %c0_39 = arith.constant 0 : index
    %c0_40 = arith.constant 0 : index
    %64 = vector.load %arg11[%c0_39, %c0_40] : memref<8x128xf32, #tpu.memory_space<vmem>>, vector<8x128xf32>
    tpu.vector_store %arg11[%c0_39, %c0_40], %63 {strides = array<i32>} : memref<8x128xf32, #tpu.memory_space<vmem>>, vector<8x128xf32>,
    %c0_41 = arith.constant 0 : index
    %c0_42 = arith.constant 0 : index
    %65 = vector.load %arg12[%c0_41, %c0_42] : memref<8x128xf32, #tpu.memory_space<vmem>>, vector<8x128xf32>
    %66 = arith.mulf %8, %8 : vector<8x128xf32>
    %67 = vector.shape_cast %66 : vector<8x128xf32> to vector<1x8x128xf32>
    %cst_43 = arith.constant dense<0.000000e+00> : vector<8x128xf32>
    %68 = vector.multi_reduction <add>, %67, %cst_43 [0] : vector<1x8x128xf32> to vector<8x128xf32>
    %69 = arith.addf %65, %68 : vector<8x128xf32>
    %c0_44 = arith.constant 0 : index
    %c0_45 = arith.constant 0 : index
    %70 = vector.load %arg12[%c0_44, %c0_45] : memref<8x128xf32, #tpu.memory_space<vmem>>, vector<8x128xf32>
    tpu.vector_store %arg12[%c0_44, %c0_45], %69 {strides = array<i32>} : memref<8x128xf32, #tpu.memory_space<vmem>>, vector<8x128xf32>,
    %c7_i32 = arith.constant 7 : i32
    %71 = arith.cmpi eq, %arg1, %c7_i32 : i32
    %c0_i32_46 = arith.constant 0 : i32
    %72 = arith.cmpi eq, %arg2, %c0_i32_46 : i32
    %73 = arith.andi %71, %72 : i1
    %74 = arith.extui %73 : i1 to i32
    %c0_i32_47 = arith.constant 0 : i32
    %75 = arith.cmpi ne, %74, %c0_i32_47 : i32
    scf.if %75 {
      %c0_48 = arith.constant 0 : index
      %c0_49 = arith.constant 0 : index
      %76 = vector.load %arg8[%c0_48, %c0_49] : memref<8x128xf32, #tpu.memory_space<vmem>>, vector<8x128xf32>
      %77 = vector.shape_cast %76 : vector<8x128xf32> to vector<1x8x128xf32>
      %cst_50 = arith.constant dense<0.000000e+00> : vector<1xf32>
      %78 = vector.multi_reduction <add>, %77, %cst_50 [1, 2] : vector<1x8x128xf32> to vector<1xf32>
      %79 = vector.shape_cast %78 : vector<1xf32> to vector<1x1x1xf32>
      %80 = vector.extract %79[0, 0, 0] : f32 from vector<1x1x1xf32>
      %c0_51 = arith.constant 0 : index
      %c0_52 = arith.constant 0 : index
      %81 = vector.load %arg9[%c0_51, %c0_52] : memref<8x128xf32, #tpu.memory_space<vmem>>, vector<8x128xf32>
      %82 = vector.shape_cast %81 : vector<8x128xf32> to vector<1x8x128xf32>
      %cst_53 = arith.constant dense<0.000000e+00> : vector<1xf32>
      %83 = vector.multi_reduction <add>, %82, %cst_53 [1, 2] : vector<1x8x128xf32> to vector<1xf32>
      %84 = vector.shape_cast %83 : vector<1xf32> to vector<1x1x1xf32>
      %85 = vector.extract %84[0, 0, 0] : f32 from vector<1x1x1xf32>
      %c0_54 = arith.constant 0 : index
      %c0_55 = arith.constant 0 : index
      %86 = vector.load %arg10[%c0_54, %c0_55] : memref<8x128xf32, #tpu.memory_space<vmem>>, vector<8x128xf32>
      %87 = vector.shape_cast %86 : vector<8x128xf32> to vector<1x8x128xf32>
      %cst_56 = arith.constant dense<0.000000e+00> : vector<1xf32>
      %88 = vector.multi_reduction <add>, %87, %cst_56 [1, 2] : vector<1x8x128xf32> to vector<1xf32>
      %89 = vector.shape_cast %88 : vector<1xf32> to vector<1x1x1xf32>
      %90 = vector.extract %89[0, 0, 0] : f32 from vector<1x1x1xf32>
      %c0_57 = arith.constant 0 : index
      %c0_58 = arith.constant 0 : index
      %91 = vector.load %arg11[%c0_57, %c0_58] : memref<8x128xf32, #tpu.memory_space<vmem>>, vector<8x128xf32>
      %92 = vector.shape_cast %91 : vector<8x128xf32> to vector<1x8x128xf32>
      %cst_59 = arith.constant dense<0.000000e+00> : vector<1xf32>
      %93 = vector.multi_reduction <add>, %92, %cst_59 [1, 2] : vector<1x8x128xf32> to vector<1xf32>
      %94 = vector.shape_cast %93 : vector<1xf32> to vector<1x1x1xf32>
      %95 = vector.extract %94[0, 0, 0] : f32 from vector<1x1x1xf32>
      %c0_60 = arith.constant 0 : index
      %c0_61 = arith.constant 0 : index
      %96 = vector.load %arg12[%c0_60, %c0_61] : memref<8x128xf32, #tpu.memory_space<vmem>>, vector<8x128xf32>
      %97 = vector.shape_cast %96 : vector<8x128xf32> to vector<1x8x128xf32>
      %cst_62 = arith.constant dense<0.000000e+00> : vector<1xf32>
      %98 = vector.multi_reduction <add>, %97, %cst_62 [1, 2] : vector<1x8x128xf32> to vector<1xf32>
      %99 = vector.shape_cast %98 : vector<1xf32> to vector<1x1x1xf32>
      %100 = vector.extract %99[0, 0, 0] : f32 from vector<1x1x1xf32>
      %101 = arith.mulf %85, %85 : f32
      %cst_63 = arith.constant 2.048000e+03 : f32
      %102 = arith.divf %101, %cst_63 : f32
      %103 = arith.subf %90, %102 : f32
      %cst_64 = arith.constant 2.048000e+03 : f32
      %cst_65 = arith.constant 1.000000e+00 : f32
      %104 = arith.subf %cst_64, %cst_65 : f32
      %105 = arith.divf %103, %104 : f32
      %106 = arith.mulf %95, %95 : f32
      %cst_66 = arith.constant 2.048000e+03 : f32
      %107 = arith.divf %106, %cst_66 : f32
      %108 = arith.subf %100, %107 : f32
      %cst_67 = arith.constant 2.048000e+03 : f32
      %cst_68 = arith.constant 1.000000e+00 : f32
      %109 = arith.subf %cst_67, %cst_68 : f32
      %110 = arith.divf %108, %109 : f32
      %cst_69 = arith.constant 0.000000e+00 : f32
      %111 = arith.maximumf %105, %cst_69 : f32
      %112 = math.sqrt %111 : f32
      %cst_70 = arith.constant 0.000000e+00 : f32
      %113 = arith.maximumf %110, %cst_70 : f32
      %114 = math.sqrt %113 : f32
      %115 = arith.subf %112, %114 : f32
      %116 = arith.subf %112, %114 : f32
      %117 = arith.mulf %115, %116 : f32
      %118 = vector.broadcast %80 : f32 to vector<8x128xf32>
      %c0_71 = arith.constant 0 : index
      %c0_72 = arith.constant 0 : index
      %c0_73 = arith.constant 0 : index
      %119 = vector.load %arg6[%c0_71, %c0_72, %c0_73] : memref<1x8x128xf32, #tpu.memory_space<vmem>>, vector<1x8x128xf32>
      %120 = vector.shape_cast %119 : vector<1x8x128xf32> to vector<8x128xf32>
      %121 = vector.shape_cast %118 : vector<8x128xf32> to vector<1x8x128xf32>
      tpu.vector_store %arg6[%c0_71, %c0_72, %c0_73], %121 {strides = array<i32>} : memref<1x8x128xf32, #tpu.memory_space<vmem>>, vector<1x8x128xf32>,
      %122 = vector.broadcast %117 : f32 to vector<8x128xf32>
      %c0_74 = arith.constant 0 : index
      %c0_75 = arith.constant 0 : index
      %c0_76 = arith.constant 0 : index
      %123 = vector.load %arg7[%c0_74, %c0_75, %c0_76] : memref<1x8x128xf32, #tpu.memory_space<vmem>>, vector<1x8x128xf32>
      %124 = vector.shape_cast %123 : vector<1x8x128xf32> to vector<8x128xf32>
      %125 = vector.shape_cast %122 : vector<8x128xf32> to vector<1x8x128xf32>
      tpu.vector_store %arg7[%c0_74, %c0_75, %c0_76], %125 {strides = array<i32>} : memref<1x8x128xf32, #tpu.memory_space<vmem>>, vector<1x8x128xf32>,
    } else {
    }
    return
  }
  func.func @transform_0(%arg0: i32, %arg1: i32, %arg2: i32) -> (i32, i32, i32, i32) {
    %c0_i32 = arith.constant 0 : i32
    %c0_i32_0 = arith.constant 0 : i32
    return %arg1, %arg0, %arg2, %c0_i32 : i32, i32, i32, i32
  }
  func.func @transform_1(%arg0: i32, %arg1: i32, %arg2: i32) -> (i32, i32, i32, i32) {
    %c0_i32 = arith.constant 0 : i32
    %c0_i32_0 = arith.constant 0 : i32
    return %arg0, %arg1, %arg2, %c0_i32 : i32, i32, i32, i32
  }
  func.func @transform_2(%arg0: i32, %arg1: i32, %arg2: i32) -> (i32, i32, i32, i32) {
    %c0_i32 = arith.constant 0 : i32
    %c0_i32_0 = arith.constant 0 : i32
    return %arg0, %arg1, %arg2, %c0_i32 : i32, i32, i32, i32
  }
  func.func @transform_3(%arg0: i32, %arg1: i32, %arg2: i32) -> (i32, i32, i32) {
    %c0_i32 = arith.constant 0 : i32
    %c0_i32_0 = arith.constant 0 : i32
    %c0_i32_1 = arith.constant 0 : i32
    return %arg0, %c0_i32, %c0_i32_0 : i32, i32, i32
  }
  func.func @transform_4(%arg0: i32, %arg1: i32, %arg2: i32) -> (i32, i32, i32) {
    %c0_i32 = arith.constant 0 : i32
    %c0_i32_0 = arith.constant 0 : i32
    %c0_i32_1 = arith.constant 0 : i32
    return %arg0, %c0_i32, %c0_i32_0 : i32, i32, i32
  }
}

</mosaic_0001>

<llo_original>
// kernel: tpu_custom_call.1
$region0: #{tpu_custom_call.1}
  #allocation0 [shape = 'u32[]', space=smem, size = 0x4, offset = 0x4, fixed_abs, tag = 'smem constant byte address 0x4 - core index']
  #allocation1 [shape = 'u32[144,128]{1,0:T(1,128)}', space=vmem, size = 0x12000, scoped, tag = 'internal scratch']
  #allocation2 [shape = 'f32[8,128]{1,0:T(8,128)}', space=vmem, size = 0x1000, scoped, tag = 'scratch operand']
  #allocation3 [shape = 'f32[8,128]{1,0:T(8,128)}', space=vmem, size = 0x1000, scoped, tag = 'scratch operand']
  #allocation4 [shape = 'f32[8,128]{1,0:T(8,128)}', space=vmem, size = 0x1000, scoped, tag = 'scratch operand']
  #allocation5 [shape = 'f32[8,128]{1,0:T(8,128)}', space=vmem, size = 0x1000, scoped, tag = 'scratch operand']
  #allocation6 [shape = 'f32[8,128]{1,0:T(8,128)}', space=vmem, size = 0x1000, scoped, tag = 'scratch operand']
  %s0 = inlined_call_operand.hbm [shape: f32[8,2,8,128], index: 0, kind: input, shape index: {}]
  %s1 = inlined_call_operand.hbm [shape: f32[2,8,8,128], index: 1, kind: input, shape index: {}]
  %s2 = inlined_call_operand.hbm [shape: f32[2,8,8,128], index: 2, kind: input, shape index: {}]
  %s3 = inlined_call_operand.hbm [shape: f32[2,8,128], index: 3, kind: output, shape index: {0}]
  %s4 = inlined_call_operand.hbm [shape: f32[2,8,128], index: 4, kind: output, shape index: {1}]
  %5 = xla_tuple %s3, %s4
  %s6 = sld [smem:[#allocation0]]
  $region73: #{tpu_custom_call.1} parent=0
    _
  %s8 = ssub.s32 1, %s6
  %s9 = scalar_select 0, %s8, %s6
  $region1: #{tpu_custom_call.1} parent=0
    #allocation7 [shape = 'u8[8192]{0}', space=vmem, size = 0x2000, scoped, tag = 'input window, operand 0']
    #allocation8 [shape = 's32[2]{0}', space=sflag, size = 0x8, scoped, tag = 'scoped memory for tpu_custom_call.1']
    #allocation9 [shape = 's32[2]{0}', space=sflag, size = 0x8, scoped, tag = 'scoped memory for tpu_custom_call.1']
    #allocation10 [shape = 'u8[8192]{0}', space=vmem, size = 0x2000, scoped, tag = 'input window, operand 1']
    #allocation11 [shape = 's32[2]{0}', space=sflag, size = 0x8, scoped, tag = 'scoped memory for tpu_custom_call.1']
    #allocation12 [shape = 'u8[8192]{0}', space=vmem, size = 0x2000, scoped, tag = 'input window, operand 2']
    #allocation13 [shape = 'u8[8192]{0}', space=vmem, size = 0x2000, scoped, tag = 'output window, operand 0']
    #allocation14 [shape = 'u8[8192]{0}', space=vmem, size = 0x2000, scoped, tag = 'output window, operand 1']
    #allocation15 [shape = 's32[2]{0}', space=sflag, size = 0x8, scoped, tag = 'scoped memory for tpu_custom_call.1']
    %10 = vsyncpa [#allocation8], 0
    %s11 = scalar_lea.sflag [#allocation8], 1
    %12 = vsyncpa %s11, 0
    %13 = vsyncpa [#allocation11], 0
    %s14 = scalar_lea.sflag [#allocation11], 1
    %15 = vsyncpa %s14, 0
    %16 = vsyncpa [#allocation9], 0
    %s17 = scalar_lea.sflag [#allocation9], 1
    %18 = vsyncpa %s17, 0
    %19 = vsyncpa [#allocation15], 0
    %s20 = scalar_lea.sflag [#allocation15], 1
    %21 = vsyncpa %s20, 0
    loop: start=0, step=1, limit=18
    $region2: #{tpu_custom_call.1} parent=1 // loop_pre_header
      _
    $region3: #{tpu_custom_call.1} parent=1 // loop_header
      %s23 = sphi 0, %s27
      %p24 = scmp.ge.s32.totalorder %s23, 18
      %s30 = sphi 0, %s49
      %s31 = sphi 0, %s45
      %s32 = sphi 0, %s41
      %s33 = sphi 0, %s30
      %s34 = sphi 0, %s31
      %s35 = sphi 0, %s32
      %s36 = sphi 0, %s33
      %s37 = sphi 0, %s34
      %s38 = sphi 0, %s35
      %s56 = sphi 0, %s58
      %s59 = sphi 0, %s56
      %s60 = sphi 0, %s59
      %s76 = sphi 0, %s60
      %s86 = sphi 0, %s88
      %s89 = sphi 0, %s86
      %s90 = sphi 0, %s89
      %s106 = sphi 0, %s90
      %s116 = sphi 0, %s118
      %s119 = sphi 0, %s116
      %s120 = sphi 0, %s119
      %s136 = sphi 0, %s120
      %s142 = sphi 0, %s144
      %s145 = sphi 0, %s142
      %s146 = sphi 0, %s145
      %s162 = sphi 0, %s146
      %s168 = sphi 0, %s170
      %s171 = sphi 0, %s168
      %s172 = sphi 0, %s171
      %s188 = sphi 0, %s172
    $region4: #{tpu_custom_call.1} parent=1 // loop_header_branch
      %26 = sbr.rel (%p24) target = $region8
    $region5: #{tpu_custom_call.1} parent=1 // loop_body
      %s28 = ssub.s32 %s23, 1
      %s29 = ssub.s32 %s23, 2
      %s39 = sadd.s32 1, %s32
      %p40 = scmp.ge.s32.totalorder %s39, 1
      %s41 = scalar_select %p40, 0, %s39
      %s42 = sadd.s32 1, %s31
      %s43 = scalar_select %p40, %s42, %s31
      %p44 = scmp.ge.s32.totalorder %s43, 8
      %s45 = scalar_select %p44, 0, %s43
      %s46 = sadd.s32 1, %s30
      %s47 = scalar_select %p44, %s46, %s30
      %p48 = scmp.ge.s32.totalorder %s47, 2
      %s49 = scalar_select %p48, 0, %s47
      %s50 = ssub.s32 %s31, %s45
      %s51 = ssub.s32 %s30, %s49
      %s52 = sor.u32 %s50, %s51
      %s53 = ssub.s32 %s32, %s41
      %s54 = sor.u32 %s52, %s53
      %p55 = scmp.eq.s32.totalorder %s54, 0
      %s57 = sadd.s32 %s56, 1
      %s58 = scalar_select %p55, %s56, %s57
      %p61 = pneg %p55
      %p62 = scmp.eq.s32.totalorder %s23, 15
      %p63 = por %p61, %p62
      %p64 = scmp.ne.s32.totalorder %s56, %s59
      %p65 = scmp.eq.s32.totalorder %s23, 0
      %p66 = por %p64, %p65
      %p67 = scmp.ne.s32.totalorder %s56, %s59
      %p68 = scmp.eq.s32.totalorder %s28, 15
      %p69 = por %p67, %p68
      %p70 = scmp.ne.s32.totalorder %s59, %s60
      %p71 = scmp.eq.s32.totalorder %s28, 0
      %p72 = por %p70, %p71
      %p73 = scmp.ne.s32.totalorder %s59, %s60
      %p74 = scmp.eq.s32.totalorder %s29, 15
      %p75 = por %p73, %p74
      %p77 = scmp.ne.s32.totalorder %s60, %s76
      %p78 = scmp.eq.s32.totalorder %s29, 0
      %p79 = por %p77, %p78
      %s80 = ssub.s32 %s30, %s49
      %s81 = ssub.s32 %s31, %s45
      %s82 = sor.u32 %s80, %s81
      %s83 = ssub.s32 %s32, %s41
      %s84 = sor.u32 %s82, %s83
      %p85 = scmp.eq.s32.totalorder %s84, 0
      %s87 = sadd.s32 %s86, 1
      %s88 = scalar_select %p85, %s86, %s87
      %p91 = pneg %p85
      %p92 = scmp.eq.s32.totalorder %s23, 15
      %p93 = por %p91, %p92
      %p94 = scmp.ne.s32.totalorder %s86, %s89
      %p95 = scmp.eq.s32.totalorder %s23, 0
      %p96 = por %p94, %p95
      %p97 = scmp.ne.s32.totalorder %s86, %s89
      %p98 = scmp.eq.s32.totalorder %s28, 15
      %p99 = por %p97, %p98
      %p100 = scmp.ne.s32.totalorder %s89, %s90
      %p101 = scmp.eq.s32.totalorder %s28, 0
      %p102 = por %p100, %p101
      %p103 = scmp.ne.s32.totalorder %s89, %s90
      %p104 = scmp.eq.s32.totalorder %s29, 15
      %p105 = por %p103, %p104
      %p107 = scmp.ne.s32.totalorder %s90, %s106
      %p108 = scmp.eq.s32.totalorder %s29, 0
      %p109 = por %p107, %p108
      %s110 = ssub.s32 %s30, %s49
      %s111 = ssub.s32 %s31, %s45
      %s112 = sor.u32 %s110, %s111
      %s113 = ssub.s32 %s32, %s41
      %s114 = sor.u32 %s112, %s113
      %p115 = scmp.eq.s32.totalorder %s114, 0
      %s117 = sadd.s32 %s116, 1
      %s118 = scalar_select %p115, %s116, %s117
      %p121 = pneg %p115
      %p122 = scmp.eq.s32.totalorder %s23, 15
      %p123 = por %p121, %p122
      %p124 = scmp.ne.s32.totalorder %s116, %s119
      %p125 = scmp.eq.s32.totalorder %s23, 0
      %p126 = por %p124, %p125
      %p127 = scmp.ne.s32.totalorder %s116, %s119
      %p128 = scmp.eq.s32.totalorder %s28, 15
      %p129 = por %p127, %p128
      %p130 = scmp.ne.s32.totalorder %s119, %s120
      %p131 = scmp.eq.s32.totalorder %s28, 0
      %p132 = por %p130, %p131
      %p133 = scmp.ne.s32.totalorder %s119, %s120
      %p134 = scmp.eq.s32.totalorder %s29, 15
      %p135 = por %p133, %p134
      %p137 = scmp.ne.s32.totalorder %s120, %s136
      %p138 = scmp.eq.s32.totalorder %s29, 0
      %p139 = por %p137, %p138
      %s140 = ssub.s32 %s30, %s49
      %p141 = scmp.eq.s32.totalorder %s140, 0
      %s143 = sadd.s32 %s142, 1
      %s144 = scalar_select %p141, %s142, %s143
      %p147 = pneg %p141
      %p148 = scmp.eq.s32.totalorder %s23, 15
      %p149 = por %p147, %p148
      %p150 = scmp.ne.s32.totalorder %s142, %s145
      %p151 = scmp.eq.s32.totalorder %s23, 0
      %p152 = por %p150, %p151
      %p153 = scmp.ne.s32.totalorder %s142, %s145
      %p154 = scmp.eq.s32.totalorder %s28, 15
      %p155 = por %p153, %p154
      %p156 = scmp.ne.s32.totalorder %s145, %s146
      %p157 = scmp.eq.s32.totalorder %s28, 0
      %p158 = por %p156, %p157
      %p159 = scmp.ne.s32.totalorder %s145, %s146
      %p160 = scmp.eq.s32.totalorder %s29, 15
      %p161 = por %p159, %p160
      %p163 = scmp.ne.s32.totalorder %s146, %s162
      %p164 = scmp.eq.s32.totalorder %s29, 0
      %p165 = por %p163, %p164
      %s166 = ssub.s32 %s30, %s49
      %p167 = scmp.eq.s32.totalorder %s166, 0
      %s169 = sadd.s32 %s168, 1
      %s170 = scalar_select %p167, %s168, %s169
      %p173 = pneg %p167
      %p174 = scmp.eq.s32.totalorder %s23, 15
      %p175 = por %p173, %p174
      %p176 = scmp.ne.s32.totalorder %s168, %s171
      %p177 = scmp.eq.s32.totalorder %s23, 0
      %p178 = por %p176, %p177
      %p179 = scmp.ne.s32.totalorder %s168, %s171
      %p180 = scmp.eq.s32.totalorder %s28, 15
      %p181 = por %p179, %p180
      %p182 = scmp.ne.s32.totalorder %s171, %s172
      %p183 = scmp.eq.s32.totalorder %s28, 0
      %p184 = por %p182, %p183
      %p185 = scmp.ne.s32.totalorder %s171, %s172
      %p186 = scmp.eq.s32.totalorder %s29, 15
      %p187 = por %p185, %p186
      %p189 = scmp.ne.s32.totalorder %s172, %s188
      %p190 = scmp.eq.s32.totalorder %s29, 0
      %p191 = por %p189, %p190
      %p192 = scmp.le.s32.totalorder 1, %s23
      %p193 = scmp.lt.s32.totalorder %s23, 17
      %p194 = pnand %p192, %p193
      %p195 = pneg %p194
      // Predicated region
      $region9: #{tpu_custom_call.1} parent=5 // pred_check
        _
      $region10: #{tpu_custom_call.1} parent=5 // pred_check_branch
        %197 = sbr.rel (%p194) target = $region12
      $region11: #{tpu_custom_call.1} parent=5 // pred_region
        %s198 = ssub.s32 %s23, 1
      $region12: #{tpu_custom_call.1} parent=5 // pred_fallthru
        _
      %p199 = scmp.lt.s32.totalorder %s23, 16
      // Predicated region
      $region13: #{tpu_custom_call.1} parent=5 // pred_check
        %p200 = pneg %p199
      $region14: #{tpu_custom_call.1} parent=5 // pred_check_branch
        %202 = sbr.rel (%p200) target = $region16
      $region15: #{tpu_custom_call.1} parent=5 // pred_region
        // Predicated region
        $region17: #{tpu_custom_call.1} parent=15 // pred_check
          %p203 = pneg %p66
        $region18: #{tpu_custom_call.1} parent=15 // pred_check_branch
          %205 = sbr.rel (%p203) target = $region20
        $region19: #{tpu_custom_call.1} parent=15 // pred_region
          %s206 = sand.u32 %s56, 1
          %s207 = scalar_lea.sflag [#allocation8], %s206
          %s208 = sand.u32 %s56, 1
          %s209 = smul.addr %s208, 8
          %s210 = scalar_lea.vmem [#allocation7], %s209
          %s212 = ssub.s32 128, 128
          %213 = vsyncadd %s207, %s212
          %s214 = sadd.s32 %s32, %s30
          %s215 = smul.addr %s31, 2
          %s216 = sadd.s32 %s214, %s215
          %s217 = smul.addr %s216, 128
          %s218 = scalar_lea.hbm %s0, %s217
          %s220 = sshll.u32 %s210, 4
          %s221 = int_to_ptr.vmem [resolvable:$true] %s220
          %223 = dma.hbm_to_vmem [thread:$0]  %s218, 128, %s221, %s207
        $region20: #{tpu_custom_call.1} parent=15 // pred_fallthru
          _
        // Predicated region
        $region21: #{tpu_custom_call.1} parent=15 // pred_check
          %p224 = pneg %p96
        $region22: #{tpu_custom_call.1} parent=15 // pred_check_branch
          %226 = sbr.rel (%p224) target = $region24
        $region23: #{tpu_custom_call.1} parent=15 // pred_region
          %s227 = sand.u32 %s23, 1
          %s228 = scalar_lea.sflag [#allocation11], %s227
          %s229 = sand.u32 %s86, 1
          %s230 = smul.addr %s229, 8
          %s231 = scalar_lea.vmem [#allocation10], %s230
          %s233 = ssub.s32 128, 128
          %234 = vsyncadd %s228, %s233
          %s235 = sadd.s32 %s32, %s31
          %s236 = smul.addr %s30, 8
          %s237 = sadd.s32 %s235, %s236
          %s238 = smul.addr %s237, 128
          %s239 = scalar_lea.hbm %s1, %s238
          %s241 = sshll.u32 %s231, 4
          %s242 = int_to_ptr.vmem [resolvable:$true] %s241
          %244 = dma.hbm_to_vmem [thread:$0]  %s239, 128, %s242, %s228
        $region24: #{tpu_custom_call.1} parent=15 // pred_fallthru
          _
        // Predicated region
        $region25: #{tpu_custom_call.1} parent=15 // pred_check
          %p245 = pneg %p126
        $region26: #{tpu_custom_call.1} parent=15 // pred_check_branch
          %247 = sbr.rel (%p245) target = $region28
        $region27: #{tpu_custom_call.1} parent=15 // pred_region
          %s248 = sand.u32 %s23, 1
          %s249 = scalar_lea.sflag [#allocation11], %s248
          %s250 = sand.u32 %s116, 1
          %s251 = smul.addr %s250, 8
          %s252 = scalar_lea.vmem [#allocation12], %s251
          %s254 = ssub.s32 128, 128
          %255 = vsyncadd %s249, %s254
          %s256 = sadd.s32 %s32, %s31
          %s257 = smul.addr %s30, 8
          %s258 = sadd.s32 %s256, %s257
          %s259 = smul.addr %s258, 128
          %s260 = scalar_lea.hbm %s2, %s259
          %s262 = sshll.u32 %s252, 4
          %s263 = int_to_ptr.vmem [resolvable:$true] %s262
          %265 = dma.hbm_to_vmem [thread:$0]  %s260, 128, %s263, %s249
        $region28: #{tpu_custom_call.1} parent=15 // pred_fallthru
          _
      $region16: #{tpu_custom_call.1} parent=5 // pred_fallthru
        _
      %p266 = scmp.le.s32.totalorder 1, %s23
      %p267 = scmp.lt.s32.totalorder %s23, 17
      %p268 = pnand %p266, %p267
      %p269 = pneg %p268
      // Predicated region
      $region29: #{tpu_custom_call.1} parent=5 // pred_check
        _
      $region30: #{tpu_custom_call.1} parent=5 // pred_check_branch
        %271 = sbr.rel (%p268) target = $region32
      $region31: #{tpu_custom_call.1} parent=5 // pred_region
        %s272 = ssub.s32 %s23, 1
        %s273 = sand.u32 %s59, 1
        %s274 = scalar_lea.sflag [#allocation8], %s273
        %s275 = sand.u32 %s59, 1
        %s276 = smul.addr %s275, 8
        %s277 = scalar_lea.vmem [#allocation7], %s276
        // Predicated region
        $region33: #{tpu_custom_call.1} parent=31 // pred_check
          %p278 = pneg %p72
        $region34: #{tpu_custom_call.1} parent=31 // pred_check_branch
          %280 = sbr.rel (%p278) target = $region36
        $region35: #{tpu_custom_call.1} parent=31 // pred_region
          %281 = dma.done %s274, 128
        $region36: #{tpu_custom_call.1} parent=31 // pred_fallthru
          _
        %s282 = sand.u32 %s28, 1
        %s283 = scalar_lea.sflag [#allocation11], %s282
        %s284 = sand.u32 %s89, 1
        %s285 = smul.addr %s284, 8
        %s286 = scalar_lea.vmem [#allocation10], %s285
        // Predicated region
        $region37: #{tpu_custom_call.1} parent=31 // pred_check
          %p287 = pneg %p102
        $region38: #{tpu_custom_call.1} parent=31 // pred_check_branch
          %289 = sbr.rel (%p287) target = $region40
        $region39: #{tpu_custom_call.1} parent=31 // pred_region
          %290 = dma.done %s283, 128
        $region40: #{tpu_custom_call.1} parent=31 // pred_fallthru
          _
        %s291 = sand.u32 %s28, 1
        %s292 = scalar_lea.sflag [#allocation11], %s291
        %s293 = sand.u32 %s119, 1
        %s294 = smul.addr %s293, 8
        %s295 = scalar_lea.vmem [#allocation12], %s294
        // Predicated region
        $region41: #{tpu_custom_call.1} parent=31 // pred_check
          %p296 = pneg %p132
        $region42: #{tpu_custom_call.1} parent=31 // pred_check_branch
          %298 = sbr.rel (%p296) target = $region44
        $region43: #{tpu_custom_call.1} parent=31 // pred_region
          %299 = dma.done %s292, 128
        $region44: #{tpu_custom_call.1} parent=31 // pred_fallthru
          _
        %s300 = sand.u32 %s59, 1
        %s301 = scalar_lea.sflag [#allocation8], %s300
        %s302 = sand.u32 %s59, 1
        %s303 = smul.addr %s302, 8
        %s304 = scalar_lea.vmem [#allocation7], %s303
        %p305 = pneg %p72
        %p306 = pneg %p69
        %s307 = sand.u32 %s28, 1
        %s308 = scalar_lea.sflag [#allocation11], %s307
        %s309 = sand.u32 %s89, 1
        %s310 = smul.addr %s309, 8
        %s311 = scalar_lea.vmem [#allocation10], %s310
        %p312 = pneg %p102
        %p313 = pneg %p99
        %s314 = sand.u32 %s28, 1
        %s315 = scalar_lea.sflag [#allocation11], %s314
        %s316 = sand.u32 %s119, 1
        %s317 = smul.addr %s316, 8
        %s318 = scalar_lea.vmem [#allocation12], %s317
        %p319 = pneg %p132
        %p320 = pneg %p129
        %p321 = pneg %p158
        %p322 = pneg %p155
        %s323 = sand.u32 %s145, 1
        %s324 = scalar_lea.sflag [#allocation9], %s323
        %s325 = sand.u32 %s145, 1
        %s326 = smul.addr %s325, 8
        %s327 = scalar_lea.vmem [#allocation13], %s326
        %p328 = pneg %p184
        %p329 = pneg %p181
        %s330 = sand.u32 %s171, 1
        %s331 = scalar_lea.sflag [#allocation15], %s330
        %s332 = sand.u32 %s171, 1
        %s333 = smul.addr %s332, 8
        %s334 = scalar_lea.vmem [#allocation14], %s333
        %p335 = scmp.eq.s32.totalorder %s34, 0
        %p336 = scmp.eq.s32.totalorder %s35, 0
        %p337 = pnand %p335, %p336
        %p338 = pneg %p337
        // Predicated region
        $region45: #{tpu_custom_call.1} parent=31 // pred_check
          _
        $region46: #{tpu_custom_call.1} parent=31 // pred_check_branch
          %340 = sbr.rel (%p337) target = $region48
        $region47: #{tpu_custom_call.1} parent=31 // pred_region
          %341 = vst [vmem:[#allocation2] sm:$0xff] 0.0
          %342 = vst [vmem:[#allocation3] sm:$0xff] 0.0
          %343 = vst [vmem:[#allocation4] sm:$0xff] 0.0
          %344 = vst [vmem:[#allocation5] sm:$0xff] 0.0
          %345 = vst [vmem:[#allocation6] sm:$0xff] 0.0
        $region48: #{tpu_custom_call.1} parent=31 // pred_fallthru
          _
        %v346 = vld [vmem:[%s277] sm:$0xff]
        %v347 = vld [vmem:[%s286] sm:$0xff]
        %v348 = vld [vmem:[%s295] sm:$0xff]
        %vm349 = vcmp.ge.f32.partialorder %v347, 2.0
        %v350 = vsel %vm349, 1, 0
        %v351 = vcvt.s32.f32 %v350
        %v352 = vadd.f32 %v351, 1.0
        %vm353 = vcmp.ge.f32.partialorder %v347, 5.0
        %v354 = vsel %vm353, 1, 0
        %v355 = vcvt.s32.f32 %v354
        %v356 = vmul.f32 %v355, 3.0
        %v357 = vadd.f32 %v352, %v356
        %vm358 = vcmp.ge.f32.partialorder %v347, 10.0
        %v359 = vsel %vm358, 1, 0
        %v360 = vcvt.s32.f32 %v359
        %v361 = vmul.f32 %v360, 5.0
        %v362 = vadd.f32 %v357, %v361
        %vm363 = vcmp.ge.f32.partialorder %v347, 30.0
        %v364 = vsel %vm363, 1, 0
        %v365 = vcvt.s32.f32 %v364
        %v366 = vmul.f32 %v365, 20.0
        %v367 = vadd.f32 %v362, %v366
        %v368 = vmul.f32 %v367, %v348
        %v369 = vsub.f32 %v346, %v347
        %v370 = vand.u32 2147483647, %v369
        %v371 = vmul.f32 %v368, %v370
        %v372 = vld [vmem:[#allocation2] sm:$0xff]
        %v373 = vadd.f32 %v371, 0.0
        %v374 = vadd.f32 %v372, %v373
        %375 = vst [vmem:[#allocation2] sm:$0xff] %v374
        %v376 = vld [vmem:[#allocation3] sm:$0xff]
        %v377 = vadd.f32 %v346, 0.0
        %v378 = vadd.f32 %v376, %v377
        %379 = vst [vmem:[#allocation3] sm:$0xff] %v378
        %v380 = vld [vmem:[#allocation4] sm:$0xff]
        %v381 = vmul.f32 %v346, %v346
        %v382 = vadd.f32 %v381, 0.0
        %v383 = vadd.f32 %v380, %v382
        %384 = vst [vmem:[#allocation4] sm:$0xff] %v383
        %v385 = vld [vmem:[#allocation5] sm:$0xff]
        %v386 = vadd.f32 %v347, 0.0
        %v387 = vadd.f32 %v385, %v386
        %388 = vst [vmem:[#allocation5] sm:$0xff] %v387
        %v389 = vld [vmem:[#allocation6] sm:$0xff]
        %v390 = vmul.f32 %v347, %v347
        %v391 = vadd.f32 %v390, 0.0
        %v392 = vadd.f32 %v389, %v391
        %393 = vst [vmem:[#allocation6] sm:$0xff] %v392
        %p394 = scmp.eq.s32.totalorder %s34, 7
        %p395 = pnand %p394, %p336
        %p396 = pneg %p395
        // Predicated region
        $region49: #{tpu_custom_call.1} parent=31 // pred_check
          _
        $region50: #{tpu_custom_call.1} parent=31 // pred_check_branch
          %398 = sbr.rel (%p395) target = $region52
        $region51: #{tpu_custom_call.1} parent=31 // pred_region
          %v399 = vld [vmem:[#allocation2] sm:$0xff]
          %400 = vadd.xlane.f32.xlu0 %v399
          %v401 = vpop.xlane.xlu0 %400
          %v402 = vrot.slane %v401, 4
          %v403 = vadd.f32 %v401, %v402
          %v404 = vrot.slane %v403, 2
          %v405 = vadd.f32 %v403, %v404
          %v406 = vrot.slane %v405, 1
          %v407 = vadd.f32 %v405, %v406
          %s408 = vtos %v407
          %v409 = vld [vmem:[#allocation3] sm:$0xff]
          %410 = vadd.xlane.f32.xlu0 %v409
          %v411 = vpop.xlane.xlu0 %410
          %v412 = vrot.slane %v411, 4
          %v413 = vadd.f32 %v411, %v412
          %v414 = vrot.slane %v413, 2
          %v415 = vadd.f32 %v413, %v414
          %v416 = vrot.slane %v415, 1
          %v417 = vadd.f32 %v415, %v416
          %s418 = vtos %v417
          %v419 = vld [vmem:[#allocation4] sm:$0xff]
          %420 = vadd.xlane.f32.xlu0 %v419
          %v421 = vpop.xlane.xlu0 %420
          %v422 = vrot.slane %v421, 4
          %v423 = vadd.f32 %v421, %v422
          %v424 = vrot.slane %v423, 2
          %v425 = vadd.f32 %v423, %v424
          %v426 = vrot.slane %v425, 1
          %v427 = vadd.f32 %v425, %v426
          %s428 = vtos %v427
          %v429 = vld [vmem:[#allocation5] sm:$0xff]
          %430 = vadd.xlane.f32.xlu0 %v429
          %v431 = vpop.xlane.xlu0 %430
          %v432 = vrot.slane %v431, 4
          %v433 = vadd.f32 %v431, %v432
          %v434 = vrot.slane %v433, 2
          %v435 = vadd.f32 %v433, %v434
          %v436 = vrot.slane %v435, 1
          %v437 = vadd.f32 %v435, %v436
          %s438 = vtos %v437
          %v439 = vld [vmem:[#allocation6] sm:$0xff]
          %440 = vadd.xlane.f32.xlu0 %v439
          %v441 = vpop.xlane.xlu0 %440
          %v442 = vrot.slane %v441, 4
          %v443 = vadd.f32 %v441, %v442
          %v444 = vrot.slane %v443, 2
          %v445 = vadd.f32 %v443, %v444
          %v446 = vrot.slane %v445, 1
          %v447 = vadd.f32 %v445, %v446
          %s448 = vtos %v447
          %s449 = smul.f32 %s418, %s418
          %v450 = vrcp.pop 2048.0
          %s451 = vtos %v450
          %s452 = smul.f32 %s449, %s451
          %s453 = ssub.f32 %s428, %s452
          %v454 = vrcp.pop 2047.0
          %s455 = vtos %v454
          %s456 = smul.f32 %s453, %s455
          %s457 = smul.f32 %s438, %s438
          %v458 = vrcp.pop 2048.0
          %s459 = vtos %v458
          %s460 = smul.f32 %s457, %s459
          %s461 = ssub.f32 %s448, %s460
          %v462 = vrcp.pop 2047.0
          %s463 = vtos %v462
          %s464 = smul.f32 %s461, %s463
          %s465 = smax.f32 %s456, 0.0
          %v466 = vstv %s465
          %v467 = vrsqrt.pop %v466
          %v468 = vmul.f32 %v466, %v467
          %vm469 = vcmp.eq.f32.partialorder %v466, inf
          %v470 = vsel %vm469, %v466, %v468
          %vm471 = vcmp.eq.f32.partialorder %v466, 0.0
          %v472 = vand.u32 %v466, 2147483648
          %v473 = vsel %vm471, %v472, %v470
          %s474 = vtos %v473
          %s475 = smax.f32 %s464, 0.0
          %v476 = vstv %s475
          %v477 = vrsqrt.pop %v476
          %v478 = vmul.f32 %v476, %v477
          %vm479 = vcmp.eq.f32.partialorder %v476, inf
          %v480 = vsel %vm479, %v476, %v478
          %vm481 = vcmp.eq.f32.partialorder %v476, 0.0
          %v482 = vand.u32 %v476, 2147483648
          %v483 = vsel %vm481, %v482, %v480
          %s484 = vtos %v483
          %s485 = ssub.f32 %s474, %s484
          %s486 = smul.f32 %s485, %s485
          %v487 = vstv %s408
          %488 = vst [vmem:[%s327] sm:$0xff] %v487
          %v489 = vstv %s486
          %490 = vst [vmem:[%s334] sm:$0xff] %v489
        $region52: #{tpu_custom_call.1} parent=31 // pred_fallthru
          _
        %s491 = sand.u32 %s145, 1
        %s492 = scalar_lea.sflag [#allocation9], %s491
        %s493 = sand.u32 %s145, 1
        %s494 = smul.addr %s493, 8
        %s495 = scalar_lea.vmem [#allocation13], %s494
        %s496 = sand.u32 %s171, 1
        %s497 = scalar_lea.sflag [#allocation15], %s496
        %s498 = sand.u32 %s171, 1
        %s499 = smul.addr %s498, 8
        %s500 = scalar_lea.vmem [#allocation14], %s499
        // Predicated region
        $region53: #{tpu_custom_call.1} parent=31 // pred_check
          %p501 = pneg %p155
        $region54: #{tpu_custom_call.1} parent=31 // pred_check_branch
          %503 = sbr.rel (%p501) target = $region56
        $region55: #{tpu_custom_call.1} parent=31 // pred_region
          %s505 = ssub.s32 128, 128
          %506 = vsyncadd %s492, %s505
          %s507 = smul.addr %s33, 128
          %s508 = scalar_lea.hbm %s3, %s507
          %s510 = sshll.u32 %s495, 4
          %s511 = int_to_ptr.vmem [resolvable:$true] %s510
          %513 = dma.vmem_to_hbm [thread:$0]  %s511, 128, %s508, %s492
        $region56: #{tpu_custom_call.1} parent=31 // pred_fallthru
          _
        // Predicated region
        $region57: #{tpu_custom_call.1} parent=31 // pred_check
          %p514 = pneg %p181
        $region58: #{tpu_custom_call.1} parent=31 // pred_check_branch
          %516 = sbr.rel (%p514) target = $region60
        $region59: #{tpu_custom_call.1} parent=31 // pred_region
          %s518 = ssub.s32 128, 128
          %519 = vsyncadd %s497, %s518
          %s520 = smul.addr %s33, 128
          %s521 = scalar_lea.hbm %s4, %s520
          %s523 = sshll.u32 %s500, 4
          %s524 = int_to_ptr.vmem [resolvable:$true] %s523
          %526 = dma.vmem_to_hbm [thread:$0]  %s524, 128, %s521, %s497
        $region60: #{tpu_custom_call.1} parent=31 // pred_fallthru
          _
      $region32: #{tpu_custom_call.1} parent=5 // pred_fallthru
        _
      %p527 = scmp.le.s32.totalorder 2, %s23
      // Predicated region
      $region61: #{tpu_custom_call.1} parent=5 // pred_check
        %p528 = pneg %p527
      $region62: #{tpu_custom_call.1} parent=5 // pred_check_branch
        %530 = sbr.rel (%p528) target = $region64
      $region63: #{tpu_custom_call.1} parent=5 // pred_region
        %s531 = ssub.s32 %s23, 2
        // Predicated region
        $region65: #{tpu_custom_call.1} parent=63 // pred_check
          %p532 = pneg %p161
        $region66: #{tpu_custom_call.1} parent=63 // pred_check_branch
          %534 = sbr.rel (%p532) target = $region68
        $region67: #{tpu_custom_call.1} parent=63 // pred_region
          %s535 = sand.u32 %s146, 1
          %s536 = scalar_lea.sflag [#allocation9], %s535
          %s537 = sand.u32 %s146, 1
          %s538 = smul.addr %s537, 8
          %s539 = scalar_lea.vmem [#allocation13], %s538
          %540 = dma.done %s536, 128
        $region68: #{tpu_custom_call.1} parent=63 // pred_fallthru
          _
        // Predicated region
        $region69: #{tpu_custom_call.1} parent=63 // pred_check
          %p541 = pneg %p187
        $region70: #{tpu_custom_call.1} parent=63 // pred_check_branch
          %543 = sbr.rel (%p541) target = $region72
        $region71: #{tpu_custom_call.1} parent=63 // pred_region
          %s544 = sand.u32 %s172, 1
          %s545 = scalar_lea.sflag [#allocation15], %s544
          %s546 = sand.u32 %s172, 1
          %s547 = smul.addr %s546, 8
          %s548 = scalar_lea.vmem [#allocation14], %s547
          %549 = dma.done %s545, 128
        $region72: #{tpu_custom_call.1} parent=63 // pred_fallthru
          _
      $region64: #{tpu_custom_call.1} parent=5 // pred_fallthru
        _
    $region6: #{tpu_custom_call.1} parent=1 // loop_footer
      %s27 = sadd.s32 1, %s23
    $region7: #{tpu_custom_call.1} parent=1 // loop_footer_branch
      %22 = sbr.rel target = $region3
    $region8: #{tpu_custom_call.1} parent=1 // loop_exit
      _
    %550 = vsyncpa [#allocation8], 1
    %s551 = scalar_lea.sflag [#allocation8], 1
    %552 = vsyncpa %s551, 1
    %553 = vsyncpa [#allocation11], 1
    %s554 = scalar_lea.sflag [#allocation11], 1
    %555 = vsyncpa %s554, 1
    %556 = vsyncpa [#allocation9], 1
    %s557 = scalar_lea.sflag [#allocation9], 1
    %558 = vsyncpa %s557, 1
    %559 = vsyncpa [#allocation15], 1
    %s560 = scalar_lea.sflag [#allocation15], 1
    %561 = vsyncpa %s560, 1

</llo_original>
